<compile_context>
chip_gen: v5e
topology: v5e:2x2
jax: 0.10.0
libtpu: 0.0.40
codegen_flags: <defaults>
</compile_context>

<pallas_src>
import jax
import jax.numpy as jnp
import numpy as np
from jax.experimental import pallas as pl
from jax.experimental.pallas import tpu as pltpu

_BN_EPS = 1e-5


def _cam_kernel(x_ref, w1_ref, s1_ref, b1_ref, w2_ref, s2_ref, b2_ref,
                o1_ref, o2_ref, p1_acc, p2_acc):
    ct = pl.program_id(1)
    n_ct = pl.num_programs(1)
    c_tile = x_ref.shape[1]

    # Native-dtype stream from HBM, f32 math in-kernel (free VPU slack).
    xb = x_ref[0].astype(jnp.float32)                  # (c_tile, H, W)

    # Both pooled means come from the same resident tile; each C-tile owns a
    # disjoint sublane block of the (C, H)/(C, W) scratch accumulators.
    c0 = pl.multiple_of(ct * c_tile, c_tile)
    p1_acc[pl.ds(c0, c_tile), :] = jnp.mean(xb, axis=2)   # (c_tile, H)
    p2_acc[pl.ds(c0, c_tile), :] = jnp.mean(xb, axis=1)   # (c_tile, W)

    # Per-batch epilogue: 3-tap conv (zero padded) + folded eval-mode BN.
    @pl.when(ct == n_ct - 1)
    def _():
        def conv3_bn(w_ref, p, scale_ref, bias_ref):
            # out[o, n] = sum_k sum_i w[k, o, i] * p[i, n + k - 1]  (zero pad)
            n = p.shape[-1]
            r = jax.lax.broadcasted_iota(jnp.int32, (n, n), 0)
            c = jax.lax.broadcasted_iota(jnp.int32, (n, n), 1)
            s_plus = (c == r + 1).astype(jnp.float32)    # p @ s_plus : col j = p[:, j-1]
            s_minus = (c + 1 == r).astype(jnp.float32)   # p @ s_minus: col j = p[:, j+1]
            pm1 = jnp.dot(p, s_plus, preferred_element_type=jnp.float32)
            pp1 = jnp.dot(p, s_minus, preferred_element_type=jnp.float32)
            out = (jnp.dot(w_ref[1], p, preferred_element_type=jnp.float32)
                   + jnp.dot(w_ref[0], pm1, preferred_element_type=jnp.float32)
                   + jnp.dot(w_ref[2], pp1, preferred_element_type=jnp.float32))
            return out * scale_ref[...] + bias_ref[...]

        o1_ref[0] = conv3_bn(w1_ref, p1_acc[...], s1_ref, b1_ref)
        o2_ref[0] = conv3_bn(w2_ref, p2_acc[...], s2_ref, b2_ref)


def _pick_c_tile(C, H, W, in_itemsize, budget_bytes):
    """Largest divisor of C whose streamed footprint fits the budget.

    Footprint per channel: 2x native block (double buffering) + f32 cast temp.
    """
    per_c = H * W * (2 * in_itemsize + 4)
    best = 1
    for ct in range(1, C + 1):
        if C % ct == 0 and ct * per_c <= budget_bytes:
            best = ct
    return best


def channel_attention(x, params, *, c_tile=None, tile_budget_bytes=24 << 20):
    """x: (B, C, H, W), f32 or bf16.  Returns (x1, x2): (B,C,H,1), (B,C,1,W) f32."""
    B, C, H, W = x.shape
    in_itemsize = jnp.dtype(x.dtype).itemsize

    # Conv weights -> (3, C_out, C_in): lane-dense (C, C) per tap, tap on dim 0.
    w1 = jnp.transpose(params["conv1_w"][:, :, :, 0], (2, 0, 1)).astype(jnp.float32)
    w2 = jnp.transpose(params["conv2_w"][:, :, 0, :], (2, 0, 1)).astype(jnp.float32)

    # Eval-mode BN folded into a single per-channel scale / bias.
    def fold_bn(prefix):
        g, be = params[f"{prefix}_gamma"], params[f"{prefix}_beta"]
        m, v = params[f"{prefix}_mean"], params[f"{prefix}_var"]
        s = (g / jnp.sqrt(v + _BN_EPS)).astype(jnp.float32)
        return (s.reshape(C, 1),
                (be.astype(jnp.float32) - m.astype(jnp.float32) * s).reshape(C, 1))

    s1, b1 = fold_bn("bn1")
    s2, b2 = fold_bn("bn2")

    if c_tile is None:
        c_tile = _pick_c_tile(C, H, W, in_itemsize, tile_budget_bytes)
    if C % c_tile != 0:
        raise ValueError(f"c_tile={c_tile} must divide C={C}")
    CT = C // c_tile

    # VMEM budget from the actual buffers (review): streamed x (2x native +
    # f32 cast temp) + double-buffered residents/outputs + scratch + epilogue
    # temporaries (iota shift matrices) + margin.  Lower tile_budget_bytes if
    # this needs to fit v7x's 64 MiB at extreme C/H/W.
    x_tile_bytes = c_tile * H * W * (2 * in_itemsize + 4)
    resid_bytes = 2 * (2 * 3 * C * C * 4 + 4 * C * 4)
    out_bytes = 2 * (C * H + C * W) * 4
    scratch_bytes = (C * H + C * W) * 4
    epi_tmp_bytes = 4 * 4 * max(H * H, W * W)
    vmem_limit = int(min(max(x_tile_bytes + resid_bytes + out_bytes + scratch_bytes
                             + epi_tmp_bytes + (8 << 20), 32 << 20), 128 << 20))

    res = lambda shape: pl.BlockSpec(shape, lambda b, t: (0,) * len(shape))

    grid_spec = pltpu.PrefetchScalarGridSpec(
        num_scalar_prefetch=0,
        grid=(B, CT),
        in_specs=[
            pl.BlockSpec((1, c_tile, H, W), lambda b, t: (b, t, 0, 0)),
            res((3, C, C)), res((C, 1)), res((C, 1)),
            res((3, C, C)), res((C, 1)), res((C, 1)),
        ],
        out_specs=[pl.BlockSpec((1, C, H), lambda b, t: (b, 0, 0)),
                   pl.BlockSpec((1, C, W), lambda b, t: (b, 0, 0))],
        scratch_shapes=[pltpu.VMEM((C, H), jnp.float32),
                        pltpu.VMEM((C, W), jnp.float32)],
    )
    out1, out2 = pl.pallas_call(
        _cam_kernel,
        out_shape=(jax.ShapeDtypeStruct((B, C, H), jnp.float32),
                   jax.ShapeDtypeStruct((B, C, W), jnp.float32)),
        grid_spec=grid_spec,
        compiler_params=pltpu.CompilerParams(
            dimension_semantics=("parallel", "arbitrary"),
            vmem_limit_bytes=vmem_limit),
    )(x, w1, s1, b1, w2, s2, b2)   # x streamed in native dtype (no host upcast)
    return out1.reshape(B, C, H, 1), out2.reshape(B, C, 1, W)


def ref_forward(x, params):
    """Pure-JAX reference mirroring the PyTorch forward (eval-mode BN)."""
    B, C, H, W = x.shape
    w1 = params["conv1_w"].reshape(C, C, 3)
    w2 = params["conv2_w"].reshape(C, C, 3)

    p1 = jnp.mean(x, axis=3)                                   # (B, C, H)
    p1p = jnp.pad(p1, ((0, 0), (0, 0), (1, 1)))
    out1 = sum(jnp.einsum("oi,bih->boh", w1[:, :, k], p1p[:, :, k:k + H],
                          precision="highest") for k in range(3))
    s1 = params["bn1_gamma"] / jnp.sqrt(params["bn1_var"] + _BN_EPS)
    out1 = (out1 * s1[None, :, None]
            + (params["bn1_beta"] - params["bn1_mean"] * s1)[None, :, None])

    p2 = jnp.mean(x, axis=2)                                   # (B, C, W)
    p2p = jnp.pad(p2, ((0, 0), (0, 0), (1, 1)))
    out2 = sum(jnp.einsum("oi,biw->bow", w2[:, :, k], p2p[:, :, k:k + W],
                          precision="highest") for k in range(3))
    s2 = params["bn2_gamma"] / jnp.sqrt(params["bn2_var"] + _BN_EPS)
    out2 = (out2 * s2[None, :, None]
            + (params["bn2_beta"] - params["bn2_mean"] * s2)[None, :, None])
    return out1.reshape(B, C, H, 1), out2.reshape(B, C, 1, W)


if __name__ == "__main__":
    def make_params(key, C):
        ks = jax.random.split(key, 10)
        fan_in = C * 3 * 1
        u = lambda k, s, lo, hi: jax.random.uniform(k, s, jnp.float32, lo, hi)
        return {
            "conv1_w": u(ks[0], (C, C, 3, 1), -1.0, 1.0) / jnp.sqrt(jnp.float32(fan_in)),
            "conv2_w": u(ks[1], (C, C, 1, 3), -1.0, 1.0) / jnp.sqrt(jnp.float32(fan_in)),
            "bn1_gamma": u(ks[2], (C,), 0.5, 1.5),
            "bn1_beta":  0.1 * jax.random.normal(ks[3], (C,), jnp.float32),
            "bn1_mean":  0.1 * jax.random.normal(ks[4], (C,), jnp.float32),
            "bn1_var":   u(ks[5], (C,), 0.5, 1.5),
            "bn2_gamma": u(ks[6], (C,), 0.5, 1.5),
            "bn2_beta":  0.1 * jax.random.normal(ks[7], (C,), jnp.float32),
            "bn2_mean":  0.1 * jax.random.normal(ks[8], (C,), jnp.float32),
            "bn2_var":   u(ks[9], (C,), 0.5, 1.5),
        }

    key = jax.random.PRNGKey(0)
    k1, k2, k3, k4 = jax.random.split(key, 4)

    # Test 1: spec shapes, f32 input, single C tile (CT=1).
    B, C, H, W = 2, 4, 16, 16
    x = jax.random.normal(k1, (B, C, H, W), jnp.float32)
    params = make_params(k2, C)
    o1, o2 = jax.block_until_ready(channel_attention(x, params))
    r1, r2 = ref_forward(x, params)
    np.testing.assert_allclose(np.asarray(o1), np.asarray(r1), rtol=1e-5, atol=1e-5)
    np.testing.assert_allclose(np.asarray(o2), np.asarray(r2), rtol=1e-5, atol=1e-5)
    assert o1.shape == (B, C, H, 1) and o2.shape == (B, C, 1, W)

    # Test 2: native bf16 streaming + multi C-tile path (C=16, c_tile=8 -> CT=2).
    B2, C2 = 2, 16
    xb = jax.random.normal(k3, (B2, C2, H, W), jnp.float32).astype(jnp.bfloat16)
    params2 = make_params(k4, C2)
    o1b, o2b = jax.block_until_ready(channel_attention(xb, params2, c_tile=8))
    r1b, r2b = ref_forward(xb.astype(jnp.float32), params2)
    np.testing.assert_allclose(np.asarray(o1b), np.asarray(r1b), rtol=1e-4, atol=1e-4)
    np.testing.assert_allclose(np.asarray(o2b), np.asarray(r2b), rtol=1e-4, atol=1e-4)

    print("KERNEL_OK")
</pallas_src>

<mosaic_0001>
module attributes {stable_mosaic.version = 11 : i64} {
  func.func @_cam_kernel(%arg0: i32, %arg1: i32, %arg2: memref<1x4x16x16xf32, #tpu.memory_space<vmem>>, %arg3: memref<3x4x4xf32, #tpu.memory_space<vmem>>, %arg4: memref<4x1xf32, #tpu.memory_space<vmem>>, %arg5: memref<4x1xf32, #tpu.memory_space<vmem>>, %arg6: memref<3x4x4xf32, #tpu.memory_space<vmem>>, %arg7: memref<4x1xf32, #tpu.memory_space<vmem>>, %arg8: memref<4x1xf32, #tpu.memory_space<vmem>>, %arg9: memref<1x4x16xf32, #tpu.memory_space<vmem>>, %arg10: memref<1x4x16xf32, #tpu.memory_space<vmem>>, %arg11: memref<4x16xf32, #tpu.memory_space<vmem>>, %arg12: memref<4x16xf32, #tpu.memory_space<vmem>>) attributes {dimension_semantics = [#tpu.dimension_semantics<parallel>, #tpu.dimension_semantics<arbitrary>], iteration_bounds = array<i64: 2, 1>, scalar_prefetch = 0 : i64, scratch_operands = 2 : i64, tpu.core_type = #tpu.core_type<tc>, window_params = [{transform_indices = @transform_0, window_bounds = array<i64: 1, 4, 16, 16>}, {pipeline_mode = #tpu.pipeline_mode<synchronous>, transform_indices = @transform_1, window_bounds = array<i64: 3, 4, 4>}, {pipeline_mode = #tpu.pipeline_mode<synchronous>, transform_indices = @transform_2, window_bounds = array<i64: 4, 1>}, {pipeline_mode = #tpu.pipeline_mode<synchronous>, transform_indices = @transform_3, window_bounds = array<i64: 4, 1>}, {pipeline_mode = #tpu.pipeline_mode<synchronous>, transform_indices = @transform_4, window_bounds = array<i64: 3, 4, 4>}, {pipeline_mode = #tpu.pipeline_mode<synchronous>, transform_indices = @transform_5, window_bounds = array<i64: 4, 1>}, {pipeline_mode = #tpu.pipeline_mode<synchronous>, transform_indices = @transform_6, window_bounds = array<i64: 4, 1>}, {transform_indices = @transform_7, window_bounds = array<i64: 1, 4, 16>}, {transform_indices = @transform_8, window_bounds = array<i64: 1, 4, 16>}]} {
    %c0 = arith.constant 0 : index
    %c0_0 = arith.constant 0 : index
    %c0_1 = arith.constant 0 : index
    %c0_2 = arith.constant 0 : index
    %0 = vector.load %arg2[%c0, %c0_0, %c0_1, %c0_2] : memref<1x4x16x16xf32, #tpu.memory_space<vmem>>, vector<1x4x16x16xf32>
    %1 = vector.shape_cast %0 : vector<1x4x16x16xf32> to vector<4x16x16xf32>
    %c4_i32 = arith.constant 4 : i32
    %2 = arith.muli %arg1, %c4_i32 : i32
    %3 = tpu.assume_multiple %2, 4 : i32
    %cst = arith.constant dense<0.000000e+00> : vector<4x16xf32>
    %4 = vector.multi_reduction <add>, %1, %cst [2] : vector<4x16x16xf32> to vector<4x16xf32>
    %cst_3 = arith.constant 1.600000e+01 : f32
    %5 = vector.broadcast %cst_3 : f32 to vector<4x16xf32>
    %6 = arith.divf %4, %5 : vector<4x16xf32>
    %7 = arith.index_cast %3 : i32 to index
    %c0_4 = arith.constant 0 : index
    %8 = vector.load %arg11[%7, %c0_4] : memref<4x16xf32, #tpu.memory_space<vmem>>, vector<4x16xf32>
    tpu.vector_store %arg11[%7, %c0_4], %6 {strides = array<i32>} : memref<4x16xf32, #tpu.memory_space<vmem>>, vector<4x16xf32>,
    %cst_5 = arith.constant dense<0.000000e+00> : vector<4x16xf32>
    %9 = vector.multi_reduction <add>, %1, %cst_5 [1] : vector<4x16x16xf32> to vector<4x16xf32>
    %cst_6 = arith.constant 1.600000e+01 : f32
    %10 = vector.broadcast %cst_6 : f32 to vector<4x16xf32>
    %11 = arith.divf %9, %10 : vector<4x16xf32>
    %12 = arith.index_cast %3 : i32 to index
    %c0_7 = arith.constant 0 : index
    %13 = vector.load %arg12[%12, %c0_7] : memref<4x16xf32, #tpu.memory_space<vmem>>, vector<4x16xf32>
    tpu.vector_store %arg12[%12, %c0_7], %11 {strides = array<i32>} : memref<4x16xf32, #tpu.memory_space<vmem>>, vector<4x16xf32>,
    %c0_i32 = arith.constant 0 : i32
    %14 = arith.cmpi eq, %arg1, %c0_i32 : i32
    %15 = arith.extui %14 : i1 to i32
    %c0_i32_8 = arith.constant 0 : i32
    %16 = arith.cmpi ne, %15, %c0_i32_8 : i32
    scf.if %16 {
      %c0_9 = arith.constant 0 : index
      %c0_10 = arith.constant 0 : index
      %17 = vector.load %arg11[%c0_9, %c0_10] : memref<4x16xf32, #tpu.memory_space<vmem>>, vector<4x16xf32>
      %18 = tpu.iota {dimensions = array<i32: 0>} : vector<16x16xi32>
      %19 = tpu.iota {dimensions = array<i32: 1>} : vector<16x16xi32>
      %c1_i32 = arith.constant 1 : i32
      %20 = vector.broadcast %c1_i32 : i32 to vector<16x16xi32>
      %21 = arith.addi %18, %20 : vector<16x16xi32>
      %22 = arith.cmpi eq, %19, %21 : vector<16x16xi32>
      %23 = arith.extui %22 : vector<16x16xi1> to vector<16x16xi32>
      %24 = arith.sitofp %23 : vector<16x16xi32> to vector<16x16xf32>
      %c1_i32_11 = arith.constant 1 : i32
      %25 = vector.broadcast %c1_i32_11 : i32 to vector<16x16xi32>
      %26 = arith.addi %19, %25 : vector<16x16xi32>
      %27 = arith.cmpi eq, %26, %18 : vector<16x16xi32>
      %28 = arith.extui %27 : vector<16x16xi1> to vector<16x16xi32>
      %29 = arith.sitofp %28 : vector<16x16xi32> to vector<16x16xf32>
      %cst_12 = arith.constant dense<0.000000e+00> : vector<4x16xf32>
      %30 = tpu.matmul %17, %24, %cst_12 {dimension_numbers = #tpu.dot_dimension_numbers<[1], [0], [0], [1], [0, 0, 1, 1], [], []>} : vector<4x16xf32>, vector<16x16xf32>, vector<4x16xf32> -> vector<4x16xf32>
      %cst_13 = arith.constant dense<0.000000e+00> : vector<4x16xf32>
      %31 = tpu.matmul %17, %29, %cst_13 {dimension_numbers = #tpu.dot_dimension_numbers<[1], [0], [0], [1], [0, 0, 1, 1], [], []>} : vector<4x16xf32>, vector<16x16xf32>, vector<4x16xf32> -> vector<4x16xf32>
      %c1 = arith.constant 1 : index
      %c0_14 = arith.constant 0 : index
      %c0_15 = arith.constant 0 : index
      %32 = vector.load %arg3[%c1, %c0_14, %c0_15] : memref<3x4x4xf32, #tpu.memory_space<vmem>>, vector<1x4x4xf32>
      %33 = vector.shape_cast %32 : vector<1x4x4xf32> to vector<4x4xf32>
      %cst_16 = arith.constant dense<0.000000e+00> : vector<4x16xf32>
      %34 = tpu.matmul %33, %17, %cst_16 {dimension_numbers = #tpu.dot_dimension_numbers<[1], [0], [0], [1], [0, 0, 1, 1], [], []>} : vector<4x4xf32>, vector<4x16xf32>, vector<4x16xf32> -> vector<4x16xf32>
      %c0_17 = arith.constant 0 : index
      %c0_18 = arith.constant 0 : index
      %c0_19 = arith.constant 0 : index
      %35 = vector.load %arg3[%c0_17, %c0_18, %c0_19] : memref<3x4x4xf32, #tpu.memory_space<vmem>>, vector<1x4x4xf32>
      %36 = vector.shape_cast %35 : vector<1x4x4xf32> to vector<4x4xf32>
      %cst_20 = arith.constant dense<0.000000e+00> : vector<4x16xf32>
      %37 = tpu.matmul %36, %30, %cst_20 {dimension_numbers = #tpu.dot_dimension_numbers<[1], [0], [0], [1], [0, 0, 1, 1], [], []>} : vector<4x4xf32>, vector<4x16xf32>, vector<4x16xf32> -> vector<4x16xf32>
      %38 = arith.addf %34, %37 : vector<4x16xf32>
      %c2 = arith.constant 2 : index
      %c0_21 = arith.constant 0 : index
      %c0_22 = arith.constant 0 : index
      %39 = vector.load %arg3[%c2, %c0_21, %c0_22] : memref<3x4x4xf32, #tpu.memory_space<vmem>>, vector<1x4x4xf32>
      %40 = vector.shape_cast %39 : vector<1x4x4xf32> to vector<4x4xf32>
      %cst_23 = arith.constant dense<0.000000e+00> : vector<4x16xf32>
      %41 = tpu.matmul %40, %31, %cst_23 {dimension_numbers = #tpu.dot_dimension_numbers<[1], [0], [0], [1], [0, 0, 1, 1], [], []>} : vector<4x4xf32>, vector<4x16xf32>, vector<4x16xf32> -> vector<4x16xf32>
      %42 = arith.addf %38, %41 : vector<4x16xf32>
      %c0_24 = arith.constant 0 : index
      %c0_25 = arith.constant 0 : index
      %43 = vector.load %arg4[%c0_24, %c0_25] : memref<4x1xf32, #tpu.memory_space<vmem>>, vector<4x1xf32>
      %44 = vector.broadcast %43 : vector<4x1xf32> to vector<4x16xf32>
      %45 = arith.mulf %42, %44 : vector<4x16xf32>
      %c0_26 = arith.constant 0 : index
      %c0_27 = arith.constant 0 : index
      %46 = vector.load %arg5[%c0_26, %c0_27] : memref<4x1xf32, #tpu.memory_space<vmem>>, vector<4x1xf32>
      %47 = vector.broadcast %46 : vector<4x1xf32> to vector<4x16xf32>
      %48 = arith.addf %45, %47 : vector<4x16xf32>
      %c0_28 = arith.constant 0 : index
      %c0_29 = arith.constant 0 : index
      %c0_30 = arith.constant 0 : index
      %49 = vector.load %arg9[%c0_28, %c0_29, %c0_30] : memref<1x4x16xf32, #tpu.memory_space<vmem>>, vector<1x4x16xf32>
      %50 = vector.shape_cast %49 : vector<1x4x16xf32> to vector<4x16xf32>
      %51 = vector.shape_cast %48 : vector<4x16xf32> to vector<1x4x16xf32>
      tpu.vector_store %arg9[%c0_28, %c0_29, %c0_30], %51 {strides = array<i32>} : memref<1x4x16xf32, #tpu.memory_space<vmem>>, vector<1x4x16xf32>,
      %c0_31 = arith.constant 0 : index
      %c0_32 = arith.constant 0 : index
      %52 = vector.load %arg12[%c0_31, %c0_32] : memref<4x16xf32, #tpu.memory_space<vmem>>, vector<4x16xf32>
      %53 = tpu.iota {dimensions = array<i32: 0>} : vector<16x16xi32>
      %54 = tpu.iota {dimensions = array<i32: 1>} : vector<16x16xi32>
      %c1_i32_33 = arith.constant 1 : i32
      %55 = vector.broadcast %c1_i32_33 : i32 to vector<16x16xi32>
      %56 = arith.addi %53, %55 : vector<16x16xi32>
      %57 = arith.cmpi eq, %54, %56 : vector<16x16xi32>
      %58 = arith.extui %57 : vector<16x16xi1> to vector<16x16xi32>
      %59 = arith.sitofp %58 : vector<16x16xi32> to vector<16x16xf32>
      %c1_i32_34 = arith.constant 1 : i32
      %60 = vector.broadcast %c1_i32_34 : i32 to vector<16x16xi32>
      %61 = arith.addi %54, %60 : vector<16x16xi32>
      %62 = arith.cmpi eq, %61, %53 : vector<16x16xi32>
      %63 = arith.extui %62 : vector<16x16xi1> to vector<16x16xi32>
      %64 = arith.sitofp %63 : vector<16x16xi32> to vector<16x16xf32>
      %cst_35 = arith.constant dense<0.000000e+00> : vector<4x16xf32>
      %65 = tpu.matmul %52, %59, %cst_35 {dimension_numbers = #tpu.dot_dimension_numbers<[1], [0], [0], [1], [0, 0, 1, 1], [], []>} : vector<4x16xf32>, vector<16x16xf32>, vector<4x16xf32> -> vector<4x16xf32>
      %cst_36 = arith.constant dense<0.000000e+00> : vector<4x16xf32>
      %66 = tpu.matmul %52, %64, %cst_36 {dimension_numbers = #tpu.dot_dimension_numbers<[1], [0], [0], [1], [0, 0, 1, 1], [], []>} : vector<4x16xf32>, vector<16x16xf32>, vector<4x16xf32> -> vector<4x16xf32>
      %c1_37 = arith.constant 1 : index
      %c0_38 = arith.constant 0 : index
      %c0_39 = arith.constant 0 : index
      %67 = vector.load %arg6[%c1_37, %c0_38, %c0_39] : memref<3x4x4xf32, #tpu.memory_space<vmem>>, vector<1x4x4xf32>
      %68 = vector.shape_cast %67 : vector<1x4x4xf32> to vector<4x4xf32>
      %cst_40 = arith.constant dense<0.000000e+00> : vector<4x16xf32>
      %69 = tpu.matmul %68, %52, %cst_40 {dimension_numbers = #tpu.dot_dimension_numbers<[1], [0], [0], [1], [0, 0, 1, 1], [], []>} : vector<4x4xf32>, vector<4x16xf32>, vector<4x16xf32> -> vector<4x16xf32>
      %c0_41 = arith.constant 0 : index
      %c0_42 = arith.constant 0 : index
      %c0_43 = arith.constant 0 : index
      %70 = vector.load %arg6[%c0_41, %c0_42, %c0_43] : memref<3x4x4xf32, #tpu.memory_space<vmem>>, vector<1x4x4xf32>
      %71 = vector.shape_cast %70 : vector<1x4x4xf32> to vector<4x4xf32>
      %cst_44 = arith.constant dense<0.000000e+00> : vector<4x16xf32>
      %72 = tpu.matmul %71, %65, %cst_44 {dimension_numbers = #tpu.dot_dimension_numbers<[1], [0], [0], [1], [0, 0, 1, 1], [], []>} : vector<4x4xf32>, vector<4x16xf32>, vector<4x16xf32> -> vector<4x16xf32>
      %73 = arith.addf %69, %72 : vector<4x16xf32>
      %c2_45 = arith.constant 2 : index
      %c0_46 = arith.constant 0 : index
      %c0_47 = arith.constant 0 : index
      %74 = vector.load %arg6[%c2_45, %c0_46, %c0_47] : memref<3x4x4xf32, #tpu.memory_space<vmem>>, vector<1x4x4xf32>
      %75 = vector.shape_cast %74 : vector<1x4x4xf32> to vector<4x4xf32>
      %cst_48 = arith.constant dense<0.000000e+00> : vector<4x16xf32>
      %76 = tpu.matmul %75, %66, %cst_48 {dimension_numbers = #tpu.dot_dimension_numbers<[1], [0], [0], [1], [0, 0, 1, 1], [], []>} : vector<4x4xf32>, vector<4x16xf32>, vector<4x16xf32> -> vector<4x16xf32>
      %77 = arith.addf %73, %76 : vector<4x16xf32>
      %c0_49 = arith.constant 0 : index
      %c0_50 = arith.constant 0 : index
      %78 = vector.load %arg7[%c0_49, %c0_50] : memref<4x1xf32, #tpu.memory_space<vmem>>, vector<4x1xf32>
      %79 = vector.broadcast %78 : vector<4x1xf32> to vector<4x16xf32>
      %80 = arith.mulf %77, %79 : vector<4x16xf32>
      %c0_51 = arith.constant 0 : index
      %c0_52 = arith.constant 0 : index
      %81 = vector.load %arg8[%c0_51, %c0_52] : memref<4x1xf32, #tpu.memory_space<vmem>>, vector<4x1xf32>
      %82 = vector.broadcast %81 : vector<4x1xf32> to vector<4x16xf32>
      %83 = arith.addf %80, %82 : vector<4x16xf32>
      %c0_53 = arith.constant 0 : index
      %c0_54 = arith.constant 0 : index
      %c0_55 = arith.constant 0 : index
      %84 = vector.load %arg10[%c0_53, %c0_54, %c0_55] : memref<1x4x16xf32, #tpu.memory_space<vmem>>, vector<1x4x16xf32>
      %85 = vector.shape_cast %84 : vector<1x4x16xf32> to vector<4x16xf32>
      %86 = vector.shape_cast %83 : vector<4x16xf32> to vector<1x4x16xf32>
      tpu.vector_store %arg10[%c0_53, %c0_54, %c0_55], %86 {strides = array<i32>} : memref<1x4x16xf32, #tpu.memory_space<vmem>>, vector<1x4x16xf32>,
    } else {
    }
    return
  }
  func.func @transform_0(%arg0: i32, %arg1: i32) -> (i32, i32, i32, i32) {
    %c0_i32 = arith.constant 0 : i32
    %c0_i32_0 = arith.constant 0 : i32
    %c0_i32_1 = arith.constant 0 : i32
    return %arg0, %arg1, %c0_i32, %c0_i32_0 : i32, i32, i32, i32
  }
  func.func @transform_1(%arg0: i32, %arg1: i32) -> (i32, i32, i32) {
    %c0_i32 = arith.constant 0 : i32
    %c0_i32_0 = arith.constant 0 : i32
    %c0_i32_1 = arith.constant 0 : i32
    %c0_i32_2 = arith.constant 0 : i32
    return %c0_i32, %c0_i32_0, %c0_i32_1 : i32, i32, i32
  }
  func.func @transform_2(%arg0: i32, %arg1: i32) -> (i32, i32) {
    %c0_i32 = arith.constant 0 : i32
    %c0_i32_0 = arith.constant 0 : i32
    %c0_i32_1 = arith.constant 0 : i32
    return %c0_i32, %c0_i32_0 : i32, i32
  }
  func.func @transform_3(%arg0: i32, %arg1: i32) -> (i32, i32) {
    %c0_i32 = arith.constant 0 : i32
    %c0_i32_0 = arith.constant 0 : i32
    %c0_i32_1 = arith.constant 0 : i32
    return %c0_i32, %c0_i32_0 : i32, i32
  }
  func.func @transform_4(%arg0: i32, %arg1: i32) -> (i32, i32, i32) {
    %c0_i32 = arith.constant 0 : i32
    %c0_i32_0 = arith.constant 0 : i32
    %c0_i32_1 = arith.constant 0 : i32
    %c0_i32_2 = arith.constant 0 : i32
    return %c0_i32, %c0_i32_0, %c0_i32_1 : i32, i32, i32
  }
  func.func @transform_5(%arg0: i32, %arg1: i32) -> (i32, i32) {
    %c0_i32 = arith.constant 0 : i32
    %c0_i32_0 = arith.constant 0 : i32
    %c0_i32_1 = arith.constant 0 : i32
    return %c0_i32, %c0_i32_0 : i32, i32
  }
  func.func @transform_6(%arg0: i32, %arg1: i32) -> (i32, i32) {
    %c0_i32 = arith.constant 0 : i32
    %c0_i32_0 = arith.constant 0 : i32
    %c0_i32_1 = arith.constant 0 : i32
    return %c0_i32, %c0_i32_0 : i32, i32
  }
  func.func @transform_7(%arg0: i32, %arg1: i32) -> (i32, i32, i32) {
    %c0_i32 = arith.constant 0 : i32
    %c0_i32_0 = arith.constant 0 : i32
    %c0_i32_1 = arith.constant 0 : i32
    return %arg0, %c0_i32, %c0_i32_0 : i32, i32, i32
  }
  func.func @transform_8(%arg0: i32, %arg1: i32) -> (i32, i32, i32) {
    %c0_i32 = arith.constant 0 : i32
    %c0_i32_0 = arith.constant 0 : i32
    %c0_i32_1 = arith.constant 0 : i32
    return %arg0, %c0_i32, %c0_i32_0 : i32, i32, i32
  }
}

</mosaic_0001>

<llo_original>
// kernel: tpu_custom_call.1
$region0: #{tpu_custom_call.1}
  #allocation0 [shape = 'u32[]', space=smem, size = 0x4, offset = 0x4, fixed_abs, tag = 'smem constant byte address 0x4 - core index']
  #allocation1 [shape = 'u32[72,128]{1,0:T(1,128)}', space=vmem, size = 0x9000, scoped, tag = 'internal scratch']
  #allocation2 [shape = 'f32[4,16]{1,0:T(4,128)}', space=vmem, size = 0x800, scoped, tag = 'scratch operand']
  #allocation3 [shape = 'f32[4,16]{1,0:T(4,128)}', space=vmem, size = 0x800, scoped, tag = 'scratch operand']
  %s0 = inlined_call_operand.hbm [shape: f32[2,4,16,16], index: 0, kind: input, shape index: {}]
  %s1 = inlined_call_operand.hbm [shape: f32[3,4,4], index: 1, kind: input, shape index: {}]
  %s2 = inlined_call_operand.vmem [shape: f32[4,1], index: 2, kind: input, shape index: {}]
  %s3 = inlined_call_operand.vmem [shape: f32[4,1], index: 3, kind: input, shape index: {}]
  %s4 = inlined_call_operand.hbm [shape: f32[3,4,4], index: 4, kind: input, shape index: {}]
  %s5 = inlined_call_operand.vmem [shape: f32[4,1], index: 5, kind: input, shape index: {}]
  %s6 = inlined_call_operand.vmem [shape: f32[4,1], index: 6, kind: input, shape index: {}]
  %s7 = inlined_call_operand.hbm [shape: f32[2,4,16], index: 7, kind: output, shape index: {0}]
  %s8 = inlined_call_operand.hbm [shape: f32[2,4,16], index: 8, kind: output, shape index: {1}]
  %9 = xla_tuple %s7, %s8
  %s10 = sld [smem:[#allocation0]]
  $region85: #{tpu_custom_call.1} parent=0
    _
  %s12 = ssub.s32 1, %s10
  %s13 = scalar_select 0, %s12, %s10
  $region1: #{tpu_custom_call.1} parent=0
    #allocation4 [shape = 'u8[65536]{0}', space=vmem, size = 0x10000, scoped, tag = 'input window, operand 0']
    #allocation5 [shape = 's32[2]{0}', space=sflag, size = 0x8, scoped, tag = 'scoped memory for tpu_custom_call.1']
    #allocation6 [shape = 's32[2]{0}', space=sflag, size = 0x8, scoped, tag = 'scoped memory for tpu_custom_call.1']
    #allocation7 [shape = 'u8[6144]{0}', space=vmem, size = 0x1800, scoped, tag = 'input window, operand 1, single buffered']
    #allocation8 [shape = 's32[1]{0}', space=sflag, size = 0x4, scoped, tag = 'scoped memory for tpu_custom_call.1']
    #allocation9 [shape = 'u8[6144]{0}', space=vmem, size = 0x1800, scoped, tag = 'input window, operand 4, single buffered']
    #allocation10 [shape = 'u8[4096]{0}', space=vmem, size = 0x1000, scoped, tag = 'output window, operand 0']
    #allocation11 [shape = 'u8[4096]{0}', space=vmem, size = 0x1000, scoped, tag = 'output window, operand 1']
    #allocation12 [shape = 's32[2]{0}', space=sflag, size = 0x8, scoped, tag = 'scoped memory for tpu_custom_call.1']
    %14 = vsyncpa [#allocation5], 0
    %s15 = scalar_lea.sflag [#allocation5], 1
    %16 = vsyncpa %s15, 0
    %17 = vsyncpa [#allocation8], 0
    %18 = vsyncpa [#allocation6], 0
    %s19 = scalar_lea.sflag [#allocation6], 1
    %20 = vsyncpa %s19, 0
    %21 = vsyncpa [#allocation12], 0
    %s22 = scalar_lea.sflag [#allocation12], 1
    %23 = vsyncpa %s22, 0
    loop: start=0, step=1, limit=4
    $region2: #{tpu_custom_call.1} parent=1 // loop_pre_header
      _
    $region3: #{tpu_custom_call.1} parent=1 // loop_header
      %s25 = sphi 0, %s29
      %p26 = scmp.ge.s32.totalorder %s25, 4
      %s32 = sphi 0, %s44
      %s33 = sphi 0, %s40
      %s34 = sphi 0, %s32
      %s35 = sphi 0, %s33
      %s36 = sphi 0, %s34
      %s37 = sphi 0, %s35
      %s49 = sphi 0, %s51
      %s52 = sphi 0, %s49
      %s53 = sphi 0, %s52
      %s69 = sphi 0, %s53
      %s73 = sphi 0, %s73
      %s75 = sphi 0, %s73
      %s76 = sphi 0, %s75
      %s90 = sphi 0, %s76
      %s94 = sphi 0, %s94
      %s96 = sphi 0, %s94
      %s97 = sphi 0, %s96
      %s111 = sphi 0, %s97
      %s115 = sphi 0, %s115
      %s117 = sphi 0, %s115
      %s118 = sphi 0, %s117
      %s132 = sphi 0, %s118
      %s136 = sphi 0, %s136
      %s138 = sphi 0, %s136
      %s139 = sphi 0, %s138
      %s153 = sphi 0, %s139
      %s157 = sphi 0, %s157
      %s159 = sphi 0, %s157
      %s160 = sphi 0, %s159
      %s174 = sphi 0, %s160
      %s178 = sphi 0, %s178
      %s180 = sphi 0, %s178
      %s181 = sphi 0, %s180
      %s195 = sphi 0, %s181
      %s201 = sphi 0, %s203
      %s204 = sphi 0, %s201
      %s205 = sphi 0, %s204
      %s221 = sphi 0, %s205
      %s227 = sphi 0, %s229
      %s230 = sphi 0, %s227
      %s231 = sphi 0, %s230
      %s247 = sphi 0, %s231
    $region4: #{tpu_custom_call.1} parent=1 // loop_header_branch
      %28 = sbr.rel (%p26) target = $region8
    $region5: #{tpu_custom_call.1} parent=1 // loop_body
      %s30 = ssub.s32 %s25, 1
      %s31 = ssub.s32 %s25, 2
      %s38 = sadd.s32 1, %s33
      %p39 = scmp.ge.s32.totalorder %s38, 1
      %s40 = scalar_select %p39, 0, %s38
      %s41 = sadd.s32 1, %s32
      %s42 = scalar_select %p39, %s41, %s32
      %p43 = scmp.ge.s32.totalorder %s42, 2
      %s44 = scalar_select %p43, 0, %s42
      %s45 = ssub.s32 %s32, %s44
      %s46 = ssub.s32 %s33, %s40
      %s47 = sor.u32 %s45, %s46
      %p48 = scmp.eq.s32.totalorder %s47, 0
      %s50 = sadd.s32 %s49, 1
      %s51 = scalar_select %p48, %s49, %s50
      %p54 = pneg %p48
      %p55 = scmp.eq.s32.totalorder %s25, 1
      %p56 = por %p54, %p55
      %p57 = scmp.ne.s32.totalorder %s49, %s52
      %p58 = scmp.eq.s32.totalorder %s25, 0
      %p59 = por %p57, %p58
      %p60 = scmp.ne.s32.totalorder %s49, %s52
      %p61 = scmp.eq.s32.totalorder %s30, 1
      %p62 = por %p60, %p61
      %p63 = scmp.ne.s32.totalorder %s52, %s53
      %p64 = scmp.eq.s32.totalorder %s30, 0
      %p65 = por %p63, %p64
      %p66 = scmp.ne.s32.totalorder %s52, %s53
      %p67 = scmp.eq.s32.totalorder %s31, 1
      %p68 = por %p66, %p67
      %p70 = scmp.ne.s32.totalorder %s53, %s69
      %p71 = scmp.eq.s32.totalorder %s31, 0
      %p72 = por %p70, %p71
      %s74 = sadd.s32 %s73, 1
      %p77 = scmp.eq.s32.totalorder %s25, 1
      %p78 = scmp.ne.s32.totalorder %s73, %s75
      %p79 = scmp.eq.s32.totalorder %s25, 0
      %p80 = por %p78, %p79
      %p81 = scmp.ne.s32.totalorder %s73, %s75
      %p82 = scmp.eq.s32.totalorder %s30, 1
      %p83 = por %p81, %p82
      %p84 = scmp.ne.s32.totalorder %s75, %s76
      %p85 = scmp.eq.s32.totalorder %s30, 0
      %p86 = por %p84, %p85
      %p87 = scmp.ne.s32.totalorder %s75, %s76
      %p88 = scmp.eq.s32.totalorder %s31, 1
      %p89 = por %p87, %p88
      %p91 = scmp.ne.s32.totalorder %s76, %s90
      %p92 = scmp.eq.s32.totalorder %s31, 0
      %p93 = por %p91, %p92
      %s95 = sadd.s32 %s94, 1
      %p98 = scmp.eq.s32.totalorder %s25, 1
      %p99 = scmp.ne.s32.totalorder %s94, %s96
      %p100 = scmp.eq.s32.totalorder %s25, 0
      %p101 = por %p99, %p100
      %p102 = scmp.ne.s32.totalorder %s94, %s96
      %p103 = scmp.eq.s32.totalorder %s30, 1
      %p104 = por %p102, %p103
      %p105 = scmp.ne.s32.totalorder %s96, %s97
      %p106 = scmp.eq.s32.totalorder %s30, 0
      %p107 = por %p105, %p106
      %p108 = scmp.ne.s32.totalorder %s96, %s97
      %p109 = scmp.eq.s32.totalorder %s31, 1
      %p110 = por %p108, %p109
      %p112 = scmp.ne.s32.totalorder %s97, %s111
      %p113 = scmp.eq.s32.totalorder %s31, 0
      %p114 = por %p112, %p113
      %s116 = sadd.s32 %s115, 1
      %p119 = scmp.eq.s32.totalorder %s25, 1
      %p120 = scmp.ne.s32.totalorder %s115, %s117
      %p121 = scmp.eq.s32.totalorder %s25, 0
      %p122 = por %p120, %p121
      %p123 = scmp.ne.s32.totalorder %s115, %s117
      %p124 = scmp.eq.s32.totalorder %s30, 1
      %p125 = por %p123, %p124
      %p126 = scmp.ne.s32.totalorder %s117, %s118
      %p127 = scmp.eq.s32.totalorder %s30, 0
      %p128 = por %p126, %p127
      %p129 = scmp.ne.s32.totalorder %s117, %s118
      %p130 = scmp.eq.s32.totalorder %s31, 1
      %p131 = por %p129, %p130
      %p133 = scmp.ne.s32.totalorder %s118, %s132
      %p134 = scmp.eq.s32.totalorder %s31, 0
      %p135 = por %p133, %p134
      %s137 = sadd.s32 %s136, 1
      %p140 = scmp.eq.s32.totalorder %s25, 1
      %p141 = scmp.ne.s32.totalorder %s136, %s138
      %p142 = scmp.eq.s32.totalorder %s25, 0
      %p143 = por %p141, %p142
      %p144 = scmp.ne.s32.totalorder %s136, %s138
      %p145 = scmp.eq.s32.totalorder %s30, 1
      %p146 = por %p144, %p145
      %p147 = scmp.ne.s32.totalorder %s138, %s139
      %p148 = scmp.eq.s32.totalorder %s30, 0
      %p149 = por %p147, %p148
      %p150 = scmp.ne.s32.totalorder %s138, %s139
      %p151 = scmp.eq.s32.totalorder %s31, 1
      %p152 = por %p150, %p151
      %p154 = scmp.ne.s32.totalorder %s139, %s153
      %p155 = scmp.eq.s32.totalorder %s31, 0
      %p156 = por %p154, %p155
      %s158 = sadd.s32 %s157, 1
      %p161 = scmp.eq.s32.totalorder %s25, 1
      %p162 = scmp.ne.s32.totalorder %s157, %s159
      %p163 = scmp.eq.s32.totalorder %s25, 0
      %p164 = por %p162, %p163
      %p165 = scmp.ne.s32.totalorder %s157, %s159
      %p166 = scmp.eq.s32.totalorder %s30, 1
      %p167 = por %p165, %p166
      %p168 = scmp.ne.s32.totalorder %s159, %s160
      %p169 = scmp.eq.s32.totalorder %s30, 0
      %p170 = por %p168, %p169
      %p171 = scmp.ne.s32.totalorder %s159, %s160
      %p172 = scmp.eq.s32.totalorder %s31, 1
      %p173 = por %p171, %p172
      %p175 = scmp.ne.s32.totalorder %s160, %s174
      %p176 = scmp.eq.s32.totalorder %s31, 0
      %p177 = por %p175, %p176
      %s179 = sadd.s32 %s178, 1
      %p182 = scmp.eq.s32.totalorder %s25, 1
      %p183 = scmp.ne.s32.totalorder %s178, %s180
      %p184 = scmp.eq.s32.totalorder %s25, 0
      %p185 = por %p183, %p184
      %p186 = scmp.ne.s32.totalorder %s178, %s180
      %p187 = scmp.eq.s32.totalorder %s30, 1
      %p188 = por %p186, %p187
      %p189 = scmp.ne.s32.totalorder %s180, %s181
      %p190 = scmp.eq.s32.totalorder %s30, 0
      %p191 = por %p189, %p190
      %p192 = scmp.ne.s32.totalorder %s180, %s181
      %p193 = scmp.eq.s32.totalorder %s31, 1
      %p194 = por %p192, %p193
      %p196 = scmp.ne.s32.totalorder %s181, %s195
      %p197 = scmp.eq.s32.totalorder %s31, 0
      %p198 = por %p196, %p197
      %s199 = ssub.s32 %s32, %s44
      %p200 = scmp.eq.s32.totalorder %s199, 0
      %s202 = sadd.s32 %s201, 1
      %s203 = scalar_select %p200, %s201, %s202
      %p206 = pneg %p200
      %p207 = scmp.eq.s32.totalorder %s25, 1
      %p208 = por %p206, %p207
      %p209 = scmp.ne.s32.totalorder %s201, %s204
      %p210 = scmp.eq.s32.totalorder %s25, 0
      %p211 = por %p209, %p210
      %p212 = scmp.ne.s32.totalorder %s201, %s204
      %p213 = scmp.eq.s32.totalorder %s30, 1
      %p214 = por %p212, %p213
      %p215 = scmp.ne.s32.totalorder %s204, %s205
      %p216 = scmp.eq.s32.totalorder %s30, 0
      %p217 = por %p215, %p216
      %p218 = scmp.ne.s32.totalorder %s204, %s205
      %p219 = scmp.eq.s32.totalorder %s31, 1
      %p220 = por %p218, %p219
      %p222 = scmp.ne.s32.totalorder %s205, %s221
      %p223 = scmp.eq.s32.totalorder %s31, 0
      %p224 = por %p222, %p223
      %s225 = ssub.s32 %s32, %s44
      %p226 = scmp.eq.s32.totalorder %s225, 0
      %s228 = sadd.s32 %s227, 1
      %s229 = scalar_select %p226, %s227, %s228
      %p232 = pneg %p226
      %p233 = scmp.eq.s32.totalorder %s25, 1
      %p234 = por %p232, %p233
      %p235 = scmp.ne.s32.totalorder %s227, %s230
      %p236 = scmp.eq.s32.totalorder %s25, 0
      %p237 = por %p235, %p236
      %p238 = scmp.ne.s32.totalorder %s227, %s230
      %p239 = scmp.eq.s32.totalorder %s30, 1
      %p240 = por %p238, %p239
      %p241 = scmp.ne.s32.totalorder %s230, %s231
      %p242 = scmp.eq.s32.totalorder %s30, 0
      %p243 = por %p241, %p242
      %p244 = scmp.ne.s32.totalorder %s230, %s231
      %p245 = scmp.eq.s32.totalorder %s31, 1
      %p246 = por %p244, %p245
      %p248 = scmp.ne.s32.totalorder %s231, %s247
      %p249 = scmp.eq.s32.totalorder %s31, 0
      %p250 = por %p248, %p249
      %p251 = scmp.le.s32.totalorder 1, %s25
      %p252 = scmp.lt.s32.totalorder %s25, 3
      %p253 = pnand %p251, %p252
      %p254 = pneg %p253
      // Predicated region
      $region9: #{tpu_custom_call.1} parent=5 // pred_check
        _
      $region10: #{tpu_custom_call.1} parent=5 // pred_check_branch
        %256 = sbr.rel (%p253) target = $region12
      $region11: #{tpu_custom_call.1} parent=5 // pred_region
        %s257 = ssub.s32 %s25, 1
        // Predicated region
        $region13: #{tpu_custom_call.1} parent=11 // pred_check
          %p258 = pneg %p86
        $region14: #{tpu_custom_call.1} parent=11 // pred_check_branch
          %260 = sbr.rel (%p258) target = $region16
        $region15: #{tpu_custom_call.1} parent=11 // pred_region
          %262 = vsyncadd [#allocation8], 0
          %s263 = sshll.u32 %s1, 4
          %s264 = int_to_ptr.hbm [resolvable:$true] %s263
          %s265 = sshll.u32 [#allocation7], 4
          %s266 = int_to_ptr.vmem [resolvable:$true] %s265
          %271 = dma.hbm_to_vmem [thread:$0]  %s264, 192, %s266, [#allocation8], 64, 64, 4
        $region16: #{tpu_custom_call.1} parent=11 // pred_fallthru
          _
        // Predicated region
        $region17: #{tpu_custom_call.1} parent=11 // pred_check
          %p272 = pneg %p107
        $region18: #{tpu_custom_call.1} parent=11 // pred_check_branch
          %274 = sbr.rel (%p272) target = $region20
        $region19: #{tpu_custom_call.1} parent=11 // pred_region
          _
        $region20: #{tpu_custom_call.1} parent=11 // pred_fallthru
          _
        // Predicated region
        $region21: #{tpu_custom_call.1} parent=11 // pred_check
          %p275 = pneg %p128
        $region22: #{tpu_custom_call.1} parent=11 // pred_check_branch
          %277 = sbr.rel (%p275) target = $region24
        $region23: #{tpu_custom_call.1} parent=11 // pred_region
          _
        $region24: #{tpu_custom_call.1} parent=11 // pred_fallthru
          _
        // Predicated region
        $region25: #{tpu_custom_call.1} parent=11 // pred_check
          %p278 = pneg %p149
        $region26: #{tpu_custom_call.1} parent=11 // pred_check_branch
          %280 = sbr.rel (%p278) target = $region28
        $region27: #{tpu_custom_call.1} parent=11 // pred_region
          %282 = vsyncadd [#allocation8], 0
          %s283 = sshll.u32 %s4, 4
          %s284 = int_to_ptr.hbm [resolvable:$true] %s283
          %s285 = sshll.u32 [#allocation9], 4
          %s286 = int_to_ptr.vmem [resolvable:$true] %s285
          %291 = dma.hbm_to_vmem [thread:$0]  %s284, 192, %s286, [#allocation8], 64, 64, 4
        $region28: #{tpu_custom_call.1} parent=11 // pred_fallthru
          _
        // Predicated region
        $region29: #{tpu_custom_call.1} parent=11 // pred_check
          %p292 = pneg %p170
        $region30: #{tpu_custom_call.1} parent=11 // pred_check_branch
          %294 = sbr.rel (%p292) target = $region32
        $region31: #{tpu_custom_call.1} parent=11 // pred_region
          _
        $region32: #{tpu_custom_call.1} parent=11 // pred_fallthru
          _
        // Predicated region
        $region33: #{tpu_custom_call.1} parent=11 // pred_check
          %p295 = pneg %p191
        $region34: #{tpu_custom_call.1} parent=11 // pred_check_branch
          %297 = sbr.rel (%p295) target = $region36
        $region35: #{tpu_custom_call.1} parent=11 // pred_region
          _
        $region36: #{tpu_custom_call.1} parent=11 // pred_fallthru
          _
      $region12: #{tpu_custom_call.1} parent=5 // pred_fallthru
        _
      %p298 = scmp.lt.s32.totalorder %s25, 2
      // Predicated region
      $region37: #{tpu_custom_call.1} parent=5 // pred_check
        %p299 = pneg %p298
      $region38: #{tpu_custom_call.1} parent=5 // pred_check_branch
        %301 = sbr.rel (%p299) target = $region40
      $region39: #{tpu_custom_call.1} parent=5 // pred_region
        // Predicated region
        $region41: #{tpu_custom_call.1} parent=39 // pred_check
          %p302 = pneg %p59
        $region42: #{tpu_custom_call.1} parent=39 // pred_check_branch
          %304 = sbr.rel (%p302) target = $region44
        $region43: #{tpu_custom_call.1} parent=39 // pred_region
          %s305 = sand.u32 %s49, 1
          %s306 = scalar_lea.sflag [#allocation5], %s305
          %s307 = sand.u32 %s49, 1
          %s308 = smul.addr %s307, 64
          %s309 = scalar_lea.vmem [#allocation4], %s308
          %s310 = smul.u32 4, %s33
          %312 = vsyncadd %s306, 0
          %s313 = smul.addr %s310, 2
          %s314 = smul.addr %s32, 8
          %s315 = sadd.s32 %s313, %s314
          %s316 = smul.addr %s315, 8
          %s317 = scalar_lea.hbm %s0, %s316
          %s318 = sshll.u32 %s317, 4
          %s319 = int_to_ptr.hbm [resolvable:$true] %s318
          %s320 = sshll.u32 %s309, 4
          %s321 = int_to_ptr.vmem [resolvable:$true] %s320
          %326 = dma.hbm_to_vmem [thread:$0]  %s319, 1024, %s321, %s306, 128, 128, 8
        $region44: #{tpu_custom_call.1} parent=39 // pred_fallthru
          _
      $region40: #{tpu_custom_call.1} parent=5 // pred_fallthru
        _
      %p327 = scmp.le.s32.totalorder 1, %s25
      %p328 = scmp.lt.s32.totalorder %s25, 3
      %p329 = pnand %p327, %p328
      %p330 = pneg %p329
      // Predicated region
      $region45: #{tpu_custom_call.1} parent=5 // pred_check
        _
      $region46: #{tpu_custom_call.1} parent=5 // pred_check_branch
        %332 = sbr.rel (%p329) target = $region48
      $region47: #{tpu_custom_call.1} parent=5 // pred_region
        %s333 = ssub.s32 %s25, 1
        %s334 = sand.u32 %s52, 1
        %s335 = scalar_lea.sflag [#allocation5], %s334
        %s336 = sand.u32 %s52, 1
        %s337 = smul.addr %s336, 64
        %s338 = scalar_lea.vmem [#allocation4], %s337
        // Predicated region
        $region49: #{tpu_custom_call.1} parent=47 // pred_check
          %p339 = pneg %p65
        $region50: #{tpu_custom_call.1} parent=47 // pred_check_branch
          %341 = sbr.rel (%p339) target = $region52
        $region51: #{tpu_custom_call.1} parent=47 // pred_region
          %343 = dma.done %s335, 1024
        $region52: #{tpu_custom_call.1} parent=47 // pred_fallthru
          _
        // Predicated region
        $region53: #{tpu_custom_call.1} parent=47 // pred_check
          %p344 = pneg %p86
        $region54: #{tpu_custom_call.1} parent=47 // pred_check_branch
          %346 = sbr.rel (%p344) target = $region56
        $region55: #{tpu_custom_call.1} parent=47 // pred_region
          %348 = dma.done [#allocation8], 192
        $region56: #{tpu_custom_call.1} parent=47 // pred_fallthru
          _
        // Predicated region
        $region57: #{tpu_custom_call.1} parent=47 // pred_check
          %p349 = pneg %p149
        $region58: #{tpu_custom_call.1} parent=47 // pred_check_branch
          %351 = sbr.rel (%p349) target = $region60
        $region59: #{tpu_custom_call.1} parent=47 // pred_region
          %353 = dma.done [#allocation8], 192
        $region60: #{tpu_custom_call.1} parent=47 // pred_fallthru
          _
        %s354 = sand.u32 %s52, 1
        %s355 = scalar_lea.sflag [#allocation5], %s354
        %s356 = sand.u32 %s52, 1
        %s357 = smul.addr %s356, 64
        %s358 = scalar_lea.vmem [#allocation4], %s357
        %p359 = pneg %p65
        %p360 = pneg %p62
        %p361 = pneg %p86
        %p362 = pneg %p83
        %p363 = pneg %p107
        %p364 = pneg %p104
        %p365 = pneg %p128
        %p366 = pneg %p125
        %p367 = pneg %p149
        %p368 = pneg %p146
        %p369 = pneg %p170
        %p370 = pneg %p167
        %p371 = pneg %p191
        %p372 = pneg %p188
        %p373 = pneg %p217
        %p374 = pneg %p214
        %s375 = sand.u32 %s204, 1
        %s376 = scalar_lea.sflag [#allocation6], %s375
        %s377 = sand.u32 %s204, 1
        %s378 = smul.addr %s377, 4
        %s379 = scalar_lea.vmem [#allocation10], %s378
        %p380 = pneg %p243
        %p381 = pneg %p240
        %s382 = sand.u32 %s230, 1
        %s383 = scalar_lea.sflag [#allocation12], %s382
        %s384 = sand.u32 %s230, 1
        %s385 = smul.addr %s384, 4
        %s386 = scalar_lea.vmem [#allocation11], %s385
        %s387 = smul.u32 4, %s35
        %v388 = vld [vmem:[%s338] sm:$0xff]
        %v389 = vld [vmem:[%s338 + $0x8] sm:$0xff]
        %v390 = vld [vmem:[%s338 + $0x10] sm:$0xff]
        %v391 = vld [vmem:[%s338 + $0x18] sm:$0xff]
        %v392 = vld [vmem:[%s338 + $0x20] sm:$0xff]
        %v393 = vld [vmem:[%s338 + $0x28] sm:$0xff]
        %v394 = vld [vmem:[%s338 + $0x30] sm:$0xff]
        %v395 = vld [vmem:[%s338 + $0x38] sm:$0xff]
        %s396 = smul.u32 %s35, 4
        %vm397 = vcmask 130048
        %v398 = vsel %vm397, %v388, 0.0
        %399 = vadd.xlane.f32.xlu0 %v398
        %v400 = vpop.xlane.xlu0 %399
        %v401 = vsel %vm397, %v389, 0.0
        %402 = vadd.xlane.f32.xlu0 %v401
        %v403 = vpop.xlane.xlu0 %402
        %v404 = vsel %vm397, %v390, 0.0
        %405 = vadd.xlane.f32.xlu0 %v404
        %v406 = vpop.xlane.xlu0 %405
        %v407 = vsel %vm397, %v391, 0.0
        %408 = vadd.xlane.f32.xlu0 %v407
        %v409 = vpop.xlane.xlu0 %408
        %v410 = vsel %vm397, %v392, 0.0
        %411 = vadd.xlane.f32.xlu0 %v410
        %v412 = vpop.xlane.xlu0 %411
        %v413 = vsel %vm397, %v393, 0.0
        %414 = vadd.xlane.f32.xlu0 %v413
        %v415 = vpop.xlane.xlu0 %414
        %v416 = vsel %vm397, %v394, 0.0
        %417 = vadd.xlane.f32.xlu0 %v416
        %v418 = vpop.xlane.xlu0 %417
        %v419 = vsel %vm397, %v395, 0.0
        %420 = vadd.xlane.f32.xlu0 %v419
        %v421 = vpop.xlane.xlu0 %420
        %v422 = vrcp.pop 16.0
        %v423 = vmul.f32 16.0, %v422
        %v424 = vsub.f32 1.0, %v423
        %v425 = vmul.f32 %v422, %v424
        %v426 = vadd.f32 %v422, %v425
        %vm427 = vweird.f32 %v422
        %v428 = vsel %vm427, %v422, %v426
        %v429 = vmul.f32 %v400, %v428
        %v430 = vmul.f32 %v403, %v428
        %v431 = vmul.f32 %v406, %v428
        %v432 = vmul.f32 %v409, %v428
        %v433 = vmul.f32 %v412, %v428
        %v434 = vmul.f32 %v415, %v428
        %v435 = vmul.f32 %v418, %v428
        %v436 = vmul.f32 %v421, %v428
        %v445 = vlaneseq
        %v446 = vand.u32 %v445, 127
        %v447 = vperm.slane %v429, %v446
        %v448 = vadd.s32 %v446, 4294967288
        %v449 = vperm.slane %v430, %v448
        %vm450 = vcmask 130112
        %v451 = vsel %vm450, %v449, %v447
        %v452 = vperm.slane %v431, %v446
        %v453 = vperm.slane %v432, %v448
        %v454 = vsel %vm450, %v453, %v452
        %v455 = vperm.slane %v433, %v446
        %v456 = vperm.slane %v434, %v448
        %v457 = vsel %vm450, %v456, %v455
        %v458 = vperm.slane %v435, %v446
        %v459 = vperm.slane %v436, %v448
        %v460 = vsel %vm450, %v459, %v458
        %vm461 = vcmask 1041409
        %v462 = vsel %vm461, %v454, %v451
        %vm463 = vcmask 1042434
        %v464 = vsel %vm463, %v457, %v462
        %vm465 = vcmask 1043459
        %v466 = vsel %vm465, %v460, %v464
        %s468 = scalar_lea.vmem [#allocation2], %s396
        %vm469 = vcmask 125952
        %470 = vst.msk [vmem:[%s468] sm:$0xf] %vm469, %v466
        %v471 = vadd.f32 %v398, %v401
        %v472 = vrot.slane %v471, 4
        %v473 = vadd.f32 %v471, %v472
        %v474 = vrot.slane %v473, 2
        %v475 = vadd.f32 %v473, %v474
        %v476 = vrot.slane %v475, 1
        %v477 = vadd.f32 %v475, %v476
        %v478 = vadd.f32 %v404, %v407
        %v479 = vrot.slane %v478, 4
        %v480 = vadd.f32 %v478, %v479
        %v481 = vrot.slane %v480, 2
        %v482 = vadd.f32 %v480, %v481
        %v483 = vrot.slane %v482, 1
        %v484 = vadd.f32 %v482, %v483
        %v485 = vadd.f32 %v410, %v413
        %v486 = vrot.slane %v485, 4
        %v487 = vadd.f32 %v485, %v486
        %v488 = vrot.slane %v487, 2
        %v489 = vadd.f32 %v487, %v488
        %v490 = vrot.slane %v489, 1
        %v491 = vadd.f32 %v489, %v490
        %v492 = vadd.f32 %v416, %v419
        %v493 = vrot.slane %v492, 4
        %v494 = vadd.f32 %v492, %v493
        %v495 = vrot.slane %v494, 2
        %v496 = vadd.f32 %v494, %v495
        %v497 = vrot.slane %v496, 1
        %v498 = vadd.f32 %v496, %v497
        %v499 = vmul.f32 %v477, %v428
        %v500 = vmul.f32 %v484, %v428
        %v501 = vmul.f32 %v491, %v428
        %v502 = vmul.f32 %v498, %v428
        %v507 = vsel %vm461, %v500, %v499
        %v508 = vsel %vm463, %v501, %v507
        %v509 = vsel %vm465, %v502, %v508
        %s511 = scalar_lea.vmem [#allocation3], %s396
        %512 = vst.msk [vmem:[%s511] sm:$0xf] %vm469, %v509
        %p513 = scmp.eq.s32.totalorder %s35, 0
        // Predicated region
        $region61: #{tpu_custom_call.1} parent=47 // pred_check
          %p514 = pneg %p513
        $region62: #{tpu_custom_call.1} parent=47 // pred_check_branch
          %516 = sbr.rel (%p514) target = $region64
        $region63: #{tpu_custom_call.1} parent=47 // pred_region
          %v517 = vld [vmem:[#allocation2] sm:$0xf]
          %v518 = vlaneseq
          %v519 = vshrl.u32 %v518, 7
          %v520 = vadd.s32 %v519, 8
          %v521 = vadd.s32 %v519, 1
          %v522 = vadd.s32 %v520, 1
          %vm523 = vcmp.eq.s32.totalorder %v446, %v521
          %vm524 = vcmp.eq.s32.totalorder %v446, %v522
          %v525 = vsel %vm523, 1, 0
          %v526 = vsel %vm524, 1, 0
          %v527 = vcvt.s32.f32 %v525
          %v528 = vcvt.s32.f32 %v526
          %v529 = vadd.s32 %v446, 1
          %vm530 = vcmp.eq.s32.totalorder %v529, %v519
          %vm531 = vcmp.eq.s32.totalorder %v529, %v520
          %v532 = vsel %vm530, 1, 0
          %v533 = vsel %vm531, 1, 0
          %v534 = vcvt.s32.f32 %v532
          %v535 = vcvt.s32.f32 %v533
          %v537 = vsel %vm397, %v517, 0
          %539 = vmatpush.msra.mxu0 0.0
          %540 = vmatpush.msra.mxu0 0.0
          %541 = vmatpush.msra.mxu0 0.0
          %542 = vmatpush.msra.mxu0 0.0
          %543 = vmatpush.msra.mxu0 0.0
          %544 = vmatpush.msra.mxu0 0.0
          %545 = vmatpush.msra.mxu0 0.0
          %546 = vmatpush.msra.mxu0 0.0
          %547 = vmatpush.msra.mxu0 0.0
          %548 = vmatpush.msra.mxu0 0.0
          %549 = vmatpush.msra.mxu0 0.0
          %550 = vmatpush.msra.mxu0 0.0
          %551 = vmatpush.msra.mxu0 0.0
          %552 = vmatpush.msra.mxu0 0.0
          %553 = vmatpush.msra.mxu0 %v528
          %554 = vmatpush.msra.mxu0 %v527
          %555 = vmatmul.f32.gmra.mxu0 %v537
          %v556 = vpop.f32.mrf.mxu0
          %v557 = vadd.f32 0.0, %v556
          %558 = vdwg.mxu0
          %559 = vmatpush.msra.mxu0 0.0
          %560 = vmatpush.msra.mxu0 0.0
          %561 = vmatpush.msra.mxu0 0.0
          %562 = vmatpush.msra.mxu0 0.0
          %563 = vmatpush.msra.mxu0 0.0
          %564 = vmatpush.msra.mxu0 0.0
          %565 = vmatpush.msra.mxu0 0.0
          %566 = vmatpush.msra.mxu0 0.0
          %567 = vmatpush.msra.mxu0 0.0
          %568 = vmatpush.msra.mxu0 0.0
          %569 = vmatpush.msra.mxu0 0.0
          %570 = vmatpush.msra.mxu0 0.0
          %571 = vmatpush.msra.mxu0 0.0
          %572 = vmatpush.msra.mxu0 0.0
          %573 = vmatpush.msra.mxu0 %v535
          %574 = vmatpush.msra.mxu0 %v534
          %575 = vmatmul.f32.gmra.mxu0 %v537
          %v576 = vpop.f32.mrf.mxu0
          %v577 = vadd.f32 0.0, %v576
          %578 = vdwg.mxu0
          %s579 = scalar_lea.vmem [#allocation7], 4
          %v580 = vld [vmem:[%s579] sm:$0xf]
          %v581 = vld [vmem:[#allocation7] sm:$0xf]
          %vm582 = vcmask 31744
          %v584 = vsel %vm582, %v581, 0
          %vm586 = vcmask 1043456
          %v588 = vsel %vm586, %v557, 0
          %590 = vmatpush.msra.mxu0 0.0
          %591 = vmatpush.msra.mxu0 0.0
          %592 = vmatpush.msra.mxu0 0.0
          %593 = vmatpush.msra.mxu0 0.0
          %594 = vmatpush.msra.mxu0 0.0
          %595 = vmatpush.msra.mxu0 0.0
          %596 = vmatpush.msra.mxu0 0.0
          %597 = vmatpush.msra.mxu0 0.0
          %598 = vmatpush.msra.mxu0 0.0
          %599 = vmatpush.msra.mxu0 0.0
          %600 = vmatpush.msra.mxu0 0.0
          %601 = vmatpush.msra.mxu0 0.0
          %602 = vmatpush.msra.mxu0 0.0
          %603 = vmatpush.msra.mxu0 0.0
          %604 = vmatpush.msra.mxu0 0.0
          %605 = vmatpush.msra.mxu0 %v588
          %606 = vmatmul.f32.gmra.mxu0 %v584
          %v607 = vpop.f32.mrf.mxu0
          %v608 = vadd.f32 0.0, %v607
          %609 = vdwg.mxu0
          %v611 = vsel %vm582, %v580, 0
          %v613 = vsel %vm586, %v517, 0
          %615 = vmatpush.msra.mxu0 0.0
          %616 = vmatpush.msra.mxu0 0.0
          %617 = vmatpush.msra.mxu0 0.0
          %618 = vmatpush.msra.mxu0 0.0
          %619 = vmatpush.msra.mxu0 0.0
          %620 = vmatpush.msra.mxu0 0.0
          %621 = vmatpush.msra.mxu0 0.0
          %622 = vmatpush.msra.mxu0 0.0
          %623 = vmatpush.msra.mxu0 0.0
          %624 = vmatpush.msra.mxu0 0.0
          %625 = vmatpush.msra.mxu0 0.0
          %626 = vmatpush.msra.mxu0 0.0
          %627 = vmatpush.msra.mxu0 0.0
          %628 = vmatpush.msra.mxu0 0.0
          %629 = vmatpush.msra.mxu0 0.0
          %630 = vmatpush.msra.mxu0 %v613
          %631 = vmatmul.f32.gmra.mxu0 %v611
          %v632 = vpop.f32.mrf.mxu0
          %v633 = vadd.f32 %v608, %v632
          %634 = vdwg.mxu0
          %s635 = scalar_lea.vmem [#allocation7], 8
          %v636 = vld [vmem:[%s635] sm:$0xf]
          %v638 = vsel %vm582, %v636, 0
          %v641 = vsel %vm586, %v577, 0
          %643 = vmatpush.msra.mxu0 0.0
          %644 = vmatpush.msra.mxu0 0.0
          %645 = vmatpush.msra.mxu0 0.0
          %646 = vmatpush.msra.mxu0 0.0
          %647 = vmatpush.msra.mxu0 0.0
          %648 = vmatpush.msra.mxu0 0.0
          %649 = vmatpush.msra.mxu0 0.0
          %650 = vmatpush.msra.mxu0 0.0
          %651 = vmatpush.msra.mxu0 0.0
          %652 = vmatpush.msra.mxu0 0.0
          %653 = vmatpush.msra.mxu0 0.0
          %654 = vmatpush.msra.mxu0 0.0
          %655 = vmatpush.msra.mxu0 0.0
          %656 = vmatpush.msra.mxu0 0.0
          %657 = vmatpush.msra.mxu0 0.0
          %658 = vmatpush.msra.mxu0 %v641
          %659 = vmatmul.f32.gmra.mxu0 %v638
          %v660 = vpop.f32.mrf.mxu0
          %v661 = vadd.f32 0.0, %v660
          %662 = vdwg.mxu0
          %v663 = vadd.f32 %v633, %v661
          %v664 = vld [vmem:[%s2] sm:$0xf]
          %666 = vset.pattern.permute.xlu0 0
          %667 = vperm.xlu0 %666, %v664
          %v668 = vpop.permute.xlu0 %667
          %v670 = vmul.f32 %v663, %v668
          %v671 = vld [vmem:[%s3] sm:$0xf]
          %673 = vset.pattern.permute.xlu0 0
          %674 = vperm.xlu0 %673, %v671
          %v675 = vpop.permute.xlu0 %674
          %v677 = vadd.f32 %v670, %v675
          %678 = vst.msk [vmem:[%s379] sm:$0xf] %vm469, %v677
          %v679 = vld [vmem:[#allocation3] sm:$0xf]
          %v681 = vsel %vm397, %v679, 0
          %683 = vmatpush.msra.mxu0 0.0
          %684 = vmatpush.msra.mxu0 0.0
          %685 = vmatpush.msra.mxu0 0.0
          %686 = vmatpush.msra.mxu0 0.0
          %687 = vmatpush.msra.mxu0 0.0
          %688 = vmatpush.msra.mxu0 0.0
          %689 = vmatpush.msra.mxu0 0.0
          %690 = vmatpush.msra.mxu0 0.0
          %691 = vmatpush.msra.mxu0 0.0
          %692 = vmatpush.msra.mxu0 0.0
          %693 = vmatpush.msra.mxu0 0.0
          %694 = vmatpush.msra.mxu0 0.0
          %695 = vmatpush.msra.mxu0 0.0
          %696 = vmatpush.msra.mxu0 0.0
          %697 = vmatpush.msra.mxu0 %v528
          %698 = vmatpush.msra.mxu0 %v527
          %699 = vmatmul.f32.gmra.mxu0 %v681
          %v700 = vpop.f32.mrf.mxu0
          %v701 = vadd.f32 0.0, %v700
          %702 = vdwg.mxu0
          %703 = vmatpush.msra.mxu0 0.0
          %704 = vmatpush.msra.mxu0 0.0
          %705 = vmatpush.msra.mxu0 0.0
          %706 = vmatpush.msra.mxu0 0.0
          %707 = vmatpush.msra.mxu0 0.0
          %708 = vmatpush.msra.mxu0 0.0
          %709 = vmatpush.msra.mxu0 0.0
          %710 = vmatpush.msra.mxu0 0.0
          %711 = vmatpush.msra.mxu0 0.0
          %712 = vmatpush.msra.mxu0 0.0
          %713 = vmatpush.msra.mxu0 0.0
          %714 = vmatpush.msra.mxu0 0.0
          %715 = vmatpush.msra.mxu0 0.0
          %716 = vmatpush.msra.mxu0 0.0
          %717 = vmatpush.msra.mxu0 %v535
          %718 = vmatpush.msra.mxu0 %v534
          %719 = vmatmul.f32.gmra.mxu0 %v681
          %v720 = vpop.f32.mrf.mxu0
          %v721 = vadd.f32 0.0, %v720
          %722 = vdwg.mxu0
          %s723 = scalar_lea.vmem [#allocation9], 4
          %v724 = vld [vmem:[%s723] sm:$0xf]
          %v725 = vld [vmem:[#allocation9] sm:$0xf]
          %v727 = vsel %vm582, %v725, 0
          %v730 = vsel %vm586, %v701, 0
          %732 = vmatpush.msra.mxu0 0.0
          %733 = vmatpush.msra.mxu0 0.0
          %734 = vmatpush.msra.mxu0 0.0
          %735 = vmatpush.msra.mxu0 0.0
          %736 = vmatpush.msra.mxu0 0.0
          %737 = vmatpush.msra.mxu0 0.0
          %738 = vmatpush.msra.mxu0 0.0
          %739 = vmatpush.msra.mxu0 0.0
          %740 = vmatpush.msra.mxu0 0.0
          %741 = vmatpush.msra.mxu0 0.0
          %742 = vmatpush.msra.mxu0 0.0
          %743 = vmatpush.msra.mxu0 0.0
          %744 = vmatpush.msra.mxu0 0.0
          %745 = vmatpush.msra.mxu0 0.0
          %746 = vmatpush.msra.mxu0 0.0
          %747 = vmatpush.msra.mxu0 %v730
          %748 = vmatmul.f32.gmra.mxu0 %v727
          %v749 = vpop.f32.mrf.mxu0
          %v750 = vadd.f32 0.0, %v749
          %751 = vdwg.mxu0
          %v753 = vsel %vm582, %v724, 0
          %v755 = vsel %vm586, %v679, 0
          %757 = vmatpush.msra.mxu0 0.0
          %758 = vmatpush.msra.mxu0 0.0
          %759 = vmatpush.msra.mxu0 0.0
          %760 = vmatpush.msra.mxu0 0.0
          %761 = vmatpush.msra.mxu0 0.0
          %762 = vmatpush.msra.mxu0 0.0
          %763 = vmatpush.msra.mxu0 0.0
          %764 = vmatpush.msra.mxu0 0.0
          %765 = vmatpush.msra.mxu0 0.0
          %766 = vmatpush.msra.mxu0 0.0
          %767 = vmatpush.msra.mxu0 0.0
          %768 = vmatpush.msra.mxu0 0.0
          %769 = vmatpush.msra.mxu0 0.0
          %770 = vmatpush.msra.mxu0 0.0
          %771 = vmatpush.msra.mxu0 0.0
          %772 = vmatpush.msra.mxu0 %v755
          %773 = vmatmul.f32.gmra.mxu0 %v753
          %v774 = vpop.f32.mrf.mxu0
          %v775 = vadd.f32 %v750, %v774
          %776 = vdwg.mxu0
          %s777 = scalar_lea.vmem [#allocation9], 8
          %v778 = vld [vmem:[%s777] sm:$0xf]
          %v780 = vsel %vm582, %v778, 0
          %v783 = vsel %vm586, %v721, 0
          %785 = vmatpush.msra.mxu0 0.0
          %786 = vmatpush.msra.mxu0 0.0
          %787 = vmatpush.msra.mxu0 0.0
          %788 = vmatpush.msra.mxu0 0.0
          %789 = vmatpush.msra.mxu0 0.0
          %790 = vmatpush.msra.mxu0 0.0
          %791 = vmatpush.msra.mxu0 0.0
          %792 = vmatpush.msra.mxu0 0.0
          %793 = vmatpush.msra.mxu0 0.0
          %794 = vmatpush.msra.mxu0 0.0
          %795 = vmatpush.msra.mxu0 0.0
          %796 = vmatpush.msra.mxu0 0.0
          %797 = vmatpush.msra.mxu0 0.0
          %798 = vmatpush.msra.mxu0 0.0
          %799 = vmatpush.msra.mxu0 0.0
          %800 = vmatpush.msra.mxu0 %v783
          %801 = vmatmul.f32.gmra.mxu0 %v780
          %v802 = vpop.f32.mrf.mxu0
          %v803 = vadd.f32 0.0, %v802
          %804 = vdwg.mxu0
          %v805 = vadd.f32 %v775, %v803
          %v806 = vld [vmem:[%s5] sm:$0xf]
          %808 = vset.pattern.permute.xlu0 0
          %809 = vperm.xlu0 %808, %v806
          %v810 = vpop.permute.xlu0 %809
          %v812 = vmul.f32 %v805, %v810
          %v813 = vld [vmem:[%s6] sm:$0xf]
          %815 = vset.pattern.permute.xlu0 0
          %816 = vperm.xlu0 %815, %v813
          %v817 = vpop.permute.xlu0 %816
          %v819 = vadd.f32 %v812, %v817
          %820 = vst.msk [vmem:[%s386] sm:$0xf] %vm469, %v819
        $region64: #{tpu_custom_call.1} parent=47 // pred_fallthru
          _
        %s821 = sand.u32 %s204, 1
        %s822 = scalar_lea.sflag [#allocation6], %s821
        %s823 = sand.u32 %s204, 1
        %s824 = smul.addr %s823, 4
        %s825 = scalar_lea.vmem [#allocation10], %s824
        %s826 = sand.u32 %s230, 1
        %s827 = scalar_lea.sflag [#allocation12], %s826
        %s828 = sand.u32 %s230, 1
        %s829 = smul.addr %s828, 4
        %s830 = scalar_lea.vmem [#allocation11], %s829
        // Predicated region
        $region65: #{tpu_custom_call.1} parent=47 // pred_check
          %p831 = pneg %p214
        $region66: #{tpu_custom_call.1} parent=47 // pred_check_branch
          %833 = sbr.rel (%p831) target = $region68
        $region67: #{tpu_custom_call.1} parent=47 // pred_region
          %835 = vsyncadd %s822, 0
          %s836 = smul.addr %s34, 4
          %s837 = scalar_lea.hbm %s7, %s836
          %s839 = sshll.u32 %s825, 4
          %s840 = int_to_ptr.vmem [resolvable:$true] %s839
          %s841 = sshll.u32 %s837, 4
          %s842 = int_to_ptr.hbm [resolvable:$true] %s841
          %844 = dma.vmem_to_hbm [thread:$0]  %s840, 64, %s842, %s822
        $region68: #{tpu_custom_call.1} parent=47 // pred_fallthru
          _
        // Predicated region
        $region69: #{tpu_custom_call.1} parent=47 // pred_check
          %p845 = pneg %p240
        $region70: #{tpu_custom_call.1} parent=47 // pred_check_branch
          %847 = sbr.rel (%p845) target = $region72
        $region71: #{tpu_custom_call.1} parent=47 // pred_region
          %849 = vsyncadd %s827, 0
          %s850 = smul.addr %s34, 4
          %s851 = scalar_lea.hbm %s8, %s850
          %s853 = sshll.u32 %s830, 4
          %s854 = int_to_ptr.vmem [resolvable:$true] %s853
          %s855 = sshll.u32 %s851, 4
          %s856 = int_to_ptr.hbm [resolvable:$true] %s855
          %858 = dma.vmem_to_hbm [thread:$0]  %s854, 64, %s856, %s827
        $region72: #{tpu_custom_call.1} parent=47 // pred_fallthru
          _
      $region48: #{tpu_custom_call.1} parent=5 // pred_fallthru
        _
      %p859 = scmp.le.s32.totalorder 2, %s25
      // Predicated region
      $region73: #{tpu_custom_call.1} parent=5 // pred_check
        %p860 = pneg %p859
      $region74: #{tpu_custom_call.1} parent=5 // pred_check_branch
        %862 = sbr.rel (%p860) target = $region76
      $region75: #{tpu_custom_call.1} parent=5 // pred_region
        %s863 = ssub.s32 %s25, 2
        // Predicated region
        $region77: #{tpu_custom_call.1} parent=75 // pred_check
          %p864 = pneg %p220
        $region78: #{tpu_custom_call.1} parent=75 // pred_check_branch
          %866 = sbr.rel (%p864) target = $region80
        $region79: #{tpu_custom_call.1} parent=75 // pred_region
          %s867 = sand.u32 %s205, 1
          %s868 = scalar_lea.sflag [#allocation6], %s867
          %s869 = sand.u32 %s205, 1
          %s870 = smul.addr %s869, 4
          %s871 = scalar_lea.vmem [#allocation10], %s870
          %873 = dma.done %s868, 64
        $region80: #{tpu_custom_call.1} parent=75 // pred_fallthru
          _
        // Predicated region
        $region81: #{tpu_custom_call.1} parent=75 // pred_check
          %p874 = pneg %p246
        $region82: #{tpu_custom_call.1} parent=75 // pred_check_branch
          %876 = sbr.rel (%p874) target = $region84
        $region83: #{tpu_custom_call.1} parent=75 // pred_region
          %s877 = sand.u32 %s231, 1
          %s878 = scalar_lea.sflag [#allocation12], %s877
          %s879 = sand.u32 %s231, 1
          %s880 = smul.addr %s879, 4
          %s881 = scalar_lea.vmem [#allocation11], %s880
          %883 = dma.done %s878, 64
        $region84: #{tpu_custom_call.1} parent=75 // pred_fallthru
          _
      $region76: #{tpu_custom_call.1} parent=5 // pred_fallthru
        _
    $region6: #{tpu_custom_call.1} parent=1 // loop_footer
      %s29 = sadd.s32 1, %s25
    $region7: #{tpu_custom_call.1} parent=1 // loop_footer_branch
      %24 = sbr.rel target = $region3
    $region8: #{tpu_custom_call.1} parent=1 // loop_exit
      _
    %884 = vsyncpa [#allocation5], 1
    %s885 = scalar_lea.sflag [#allocation5], 1
    %886 = vsyncpa %s885, 1
    %887 = vsyncpa [#allocation8], 1
    %888 = vsyncpa [#allocation6], 1
    %s889 = scalar_lea.sflag [#allocation6], 1
    %890 = vsyncpa %s889, 1
    %891 = vsyncpa [#allocation12], 1
    %s892 = scalar_lea.sflag [#allocation12], 1
    %893 = vsyncpa %s892, 1

</llo_original>
